<compile_context>
chip_gen: v6e
topology: v6e:2x2x1
jax: 0.10.0
libtpu: 0.0.40
codegen_flags: <defaults>
</compile_context>

<pallas_src>
import math
from functools import partial

import jax
import jax.numpy as jnp
from jax.experimental import pallas as pl
from jax.experimental.pallas import tpu as pltpu

LANE = 128     # TPU lane width; pad output feature dim to this for unmasked stores.
SUBLANE = 8    # f32 sublane tile; pad batch to a multiple of this.


def iris_affine_kernel(x_ref, w_ref, o_ref):
    # Single fused affine (bias folded into w as an extra row, matching the ones
    # column appended to x): y = x_aug @ w_aug.  All operands resident in VMEM.
    o_ref[...] = jnp.dot(
        x_ref[...], w_ref[...], preferred_element_type=jnp.float32
    ).astype(o_ref.dtype)


def init_linear_params(key, in_features, out_features):
    """Deterministic init mimicking PyTorch nn.Linear default (uniform +-1/sqrt(fan_in)).
    Returned weight is [in_features, out_features] (already transposed vs. PyTorch)."""
    kw, kb = jax.random.split(key)
    bound = 1.0 / math.sqrt(in_features)
    w = jax.random.uniform(
        kw, (in_features, out_features), jnp.float32, minval=-bound, maxval=bound
    )
    b = jax.random.uniform(
        kb, (1, out_features), jnp.float32, minval=-bound, maxval=bound
    )
    return w, b


def prepare_params(params):
    """Collapse the activation-free 3-layer chain into one affine map, fold the bias
    into the weight as an extra row, and pad lane-dense to [in_dim+1, 128].
    Done ONCE outside the kernel."""
    w1, b1 = params["layer1"]
    w2, b2 = params["layer2"]
    w3, b3 = params["layer3"]

    w_eff = w1 @ w2 @ w3                      # [in_dim, out_dim]
    b_eff = (b1 @ w2 + b2) @ w3 + b3          # [1, out_dim]

    in_dim, out_dim = w_eff.shape
    w_aug = jnp.zeros((in_dim + 1, LANE), jnp.float32)
    w_aug = w_aug.at[:in_dim, :out_dim].set(w_eff)
    w_aug = w_aug.at[in_dim:, :out_dim].set(b_eff)   # last row == effective bias
    return w_aug, out_dim


@partial(jax.jit, static_argnames=("out_dim",))
def iris_network_forward(x, w_aug, *, out_dim):
    """x: [B, in_dim] float32.  w_aug: [in_dim+1, 128] (lane-padded, bias in last row)."""
    B, in_dim = x.shape
    b_pad = ((B + SUBLANE - 1) // SUBLANE) * SUBLANE

    # Append the ones column that multiplies the folded-in bias row; pad batch to a
    # multiple of 8 so the store stays unmasked / tile-aligned on all generations.
    x_aug = jnp.concatenate([x, jnp.ones((B, 1), x.dtype)], axis=1)
    if b_pad != B:
        x_aug = jnp.pad(x_aug, ((0, b_pad - B), (0, 0)))

    vmem = pl.BlockSpec(memory_space=pltpu.MemorySpace.VMEM)
    y_pad = pl.pallas_call(
        iris_affine_kernel,
        out_shape=jax.ShapeDtypeStruct((b_pad, LANE), x.dtype),
        in_specs=[vmem, vmem],
        out_specs=vmem,
    )(x_aug, w_aug)

    # Lane-dense [B_pad, 128] tile written unmasked inside the kernel; the trim
    # fuses under jit (no second materialized HBM array).
    return y_pad[:B, :out_dim]


if __name__ == "__main__":
    in_dim, out_dim = 4, 3  # iris: 4 features -> 3 classes
    batch = 8

    root = jax.random.PRNGKey(0)
    kx, k1, k2, k3 = jax.random.split(root, 4)

    params = {
        "layer1": init_linear_params(k1, in_dim, 10),
        "layer2": init_linear_params(k2, 10, 6),
        "layer3": init_linear_params(k3, 6, out_dim),
    }

    x = jax.random.normal(kx, (batch, in_dim), jnp.float32)

    w_aug, od = prepare_params(params)
    y = iris_network_forward(x, w_aug, out_dim=od)
    y = jax.block_until_ready(y)

    # pure-JAX reference of the ORIGINAL 3-layer forward (unsimplified)
    def ref(x, p):
        h = x @ p["layer1"][0] + p["layer1"][1]
        h = h @ p["layer2"][0] + p["layer2"][1]
        return h @ p["layer3"][0] + p["layer3"][1]

    assert y.shape == (batch, out_dim)
    assert jnp.allclose(y, ref(x, params), atol=1e-5, rtol=1e-5)

    print("KERNEL_OK")
</pallas_src>

<mosaic_0001>
module attributes {stable_mosaic.version = 11 : i64} {
  func.func @iris_affine_kernel(%arg0: memref<8x5xf32, #tpu.memory_space<vmem>>, %arg1: memref<5x128xf32, #tpu.memory_space<vmem>>, %arg2: memref<8x128xf32, #tpu.memory_space<vmem>>) attributes {dimension_semantics = [], scalar_prefetch = 0 : i64, scratch_operands = 0 : i64, tpu.core_type = #tpu.core_type<tc>} {
    %c0 = arith.constant 0 : index
    %c0_0 = arith.constant 0 : index
    %0 = vector.load %arg0[%c0, %c0_0] : memref<8x5xf32, #tpu.memory_space<vmem>>, vector<8x5xf32>
    %c0_1 = arith.constant 0 : index
    %c0_2 = arith.constant 0 : index
    %1 = vector.load %arg1[%c0_1, %c0_2] : memref<5x128xf32, #tpu.memory_space<vmem>>, vector<5x128xf32>
    %cst = arith.constant dense<0.000000e+00> : vector<8x128xf32>
    %2 = tpu.matmul %0, %1, %cst {dimension_numbers = #tpu.dot_dimension_numbers<[1], [0], [0], [1], [0, 0, 1, 1], [], []>} : vector<8x5xf32>, vector<5x128xf32>, vector<8x128xf32> -> vector<8x128xf32>
    %c0_3 = arith.constant 0 : index
    %c0_4 = arith.constant 0 : index
    %3 = vector.load %arg2[%c0_3, %c0_4] : memref<8x128xf32, #tpu.memory_space<vmem>>, vector<8x128xf32>
    tpu.vector_store %arg2[%c0_3, %c0_4], %2 {strides = array<i32>} : memref<8x128xf32, #tpu.memory_space<vmem>>, vector<8x128xf32>,
    return
  }
}

</mosaic_0001>

<llo_original>
// kernel: iris_network_forward.1
$region0: #{iris_network_forward.1}
  #allocation0 [shape = 'u32[]', space=smem, size = 0x4, offset = 0x4, fixed_abs, tag = 'smem constant byte address 0x4 - core index']
  #allocation1 [shape = 'u32[144,128]{1,0:T(1,128)}', space=vmem, size = 0x12000, scoped, tag = 'internal scratch']
  %s0 = inlined_call_operand.vmem [shape: f32[8,5], index: 0, kind: input, shape index: {}]
  %s1 = inlined_call_operand.vmem [shape: f32[5,128], index: 1, kind: input, shape index: {}]
  %s2 = inlined_call_operand.vmem [shape: f32[8,128], index: 2, kind: output, shape index: {}]
  %s3 = sld [smem:[#allocation0]]
  $region18: #{iris_network_forward.1} parent=0
    _
  %s5 = ssub.s32 1, %s3
  %s6 = scalar_select 0, %s5, %s3
  // Predicated region
  $region2: #{iris_network_forward.1} parent=0 // pred_check
    _
  $region3: #{iris_network_forward.1} parent=0 // pred_check_branch
    %8 = sbr.rel (0) target = $region5
  $region4: #{iris_network_forward.1} parent=0 // pred_region
    _
  $region5: #{iris_network_forward.1} parent=0 // pred_fallthru
    _
  // Predicated region
  $region6: #{iris_network_forward.1} parent=0 // pred_check
    _
  $region7: #{iris_network_forward.1} parent=0 // pred_check_branch
    %10 = sbr.rel (0) target = $region9
  $region8: #{iris_network_forward.1} parent=0 // pred_region
    _
  $region9: #{iris_network_forward.1} parent=0 // pred_fallthru
    _
  %v11 = vld [vmem:[%s0] sm:$0xff]
  %v12 = vld [vmem:[%s1] sm:$0x1f]
  %vm13 = vcmask 39936
  %v15 = vsel %vm13, %v11, 0
  %vm17 = vcmask 1044480
  %v19 = vsel %vm17, %v12, 0
  %21 = vmatprep.subr.mxu0 0.0
  %22 = vmatpush1.msra.mxu0 0.0
  %23 = vmatprep.subr.mxu0 0.0
  %24 = vmatpush1.msra.mxu0 0.0
  %25 = vmatprep.subr.mxu0 0.0
  %26 = vmatpush1.msra.mxu0 0.0
  %27 = vmatprep.subr.mxu0 0.0
  %28 = vmatpush1.msra.mxu0 0.0
  %29 = vmatprep.subr.mxu0 0.0
  %30 = vmatpush1.msra.mxu0 0.0
  %31 = vmatprep.subr.mxu0 0.0
  %32 = vmatpush1.msra.mxu0 0.0
  %33 = vmatprep.subr.mxu0 0.0
  %34 = vmatpush1.msra.mxu0 0.0
  %35 = vmatprep.subr.mxu0 0.0
  %36 = vmatpush1.msra.mxu0 0.0
  %37 = vmatprep.subr.mxu0 0.0
  %38 = vmatpush1.msra.mxu0 0.0
  %39 = vmatprep.subr.mxu0 0.0
  %40 = vmatpush1.msra.mxu0 0.0
  %41 = vmatprep.subr.mxu0 0.0
  %42 = vmatpush1.msra.mxu0 0.0
  %43 = vmatprep.subr.mxu0 0.0
  %44 = vmatpush1.msra.mxu0 0.0
  %45 = vmatprep.subr.mxu0 0.0
  %46 = vmatpush1.msra.mxu0 0.0
  %47 = vmatprep.subr.mxu0 0.0
  %48 = vmatpush1.msra.mxu0 0.0
  %49 = vmatprep.subr.mxu0 0.0
  %50 = vmatpush1.msra.mxu0 0.0
  %51 = vmatprep.subr.mxu0 0.0
  %52 = vmatpush1.msra.mxu0 %v19
  %53 = vmatprep.subr.mxu0 0.0
  %54 = vmatpush2.msra.mxu0 0.0
  %55 = vmatprep.subr.mxu0 0.0
  %56 = vmatpush2.msra.mxu0 0.0
  %57 = vmatprep.subr.mxu0 0.0
  %58 = vmatpush2.msra.mxu0 0.0
  %59 = vmatprep.subr.mxu0 0.0
  %60 = vmatpush2.msra.mxu0 0.0
  %61 = vmatprep.subr.mxu0 0.0
  %62 = vmatpush2.msra.mxu0 0.0
  %63 = vmatprep.subr.mxu0 0.0
  %64 = vmatpush2.msra.mxu0 0.0
  %65 = vmatprep.subr.mxu0 0.0
  %66 = vmatpush2.msra.mxu0 0.0
  %67 = vmatprep.subr.mxu0 0.0
  %68 = vmatpush2.msra.mxu0 0.0
  %69 = vmatprep.subr.mxu0 0.0
  %70 = vmatpush2.msra.mxu0 0.0
  %71 = vmatprep.subr.mxu0 0.0
  %72 = vmatpush2.msra.mxu0 0.0
  %73 = vmatprep.subr.mxu0 0.0
  %74 = vmatpush2.msra.mxu0 0.0
  %75 = vmatprep.subr.mxu0 0.0
  %76 = vmatpush2.msra.mxu0 0.0
  %77 = vmatprep.subr.mxu0 0.0
  %78 = vmatpush2.msra.mxu0 0.0
  %79 = vmatprep.subr.mxu0 0.0
  %80 = vmatpush2.msra.mxu0 0.0
  %81 = vmatprep.subr.mxu0 0.0
  %82 = vmatpush2.msra.mxu0 0.0
  %83 = vmatprep.subr.mxu0 0.0
  %84 = vmatpush2.msra.mxu0 0.0
  %85 = vmatprep.mubr.f32.mxu0 0.0
  %86 = vmatmul.mubr.f32.gmra.mxu0 %v15
  %v87 = vpop.f32.mrf.mxu0
  %v88 = vadd.f32 0.0, %v87
  %v89 = vpop.f32.mrf.mxu0
  %90 = vdwg.mxu0
  %91 = vst [vmem:[%s2] sm:$0xff] %v88
  // Predicated region
  $region10: #{iris_network_forward.1} parent=0 // pred_check
    _
  $region11: #{iris_network_forward.1} parent=0 // pred_check_branch
    %93 = sbr.rel (0) target = $region13
  $region12: #{iris_network_forward.1} parent=0 // pred_region
    _
  $region13: #{iris_network_forward.1} parent=0 // pred_fallthru
    _
  // Predicated region
  $region14: #{iris_network_forward.1} parent=0 // pred_check
    _
  $region15: #{iris_network_forward.1} parent=0 // pred_check_branch
    %95 = sbr.rel (0) target = $region17
  $region16: #{iris_network_forward.1} parent=0 // pred_region
    _
  $region17: #{iris_network_forward.1} parent=0 // pred_fallthru
    _

</llo_original>
